<compile_context>
chip_gen: v7x
topology: tpu7x:2x2x1
jax: 0.10.0
libtpu: 0.0.40
codegen_flags: <defaults>
</compile_context>

<pallas_src>
import functools

import jax
import jax.numpy as jnp
import numpy as np
from jax.experimental import pallas as pl
from jax.experimental.pallas import tpu as pltpu

_MIB = 1024 * 1024


def _round_up(a, b):
    return -(-a // b) * b


def _sublane_tile(dtype):
    return {4: 8, 2: 16, 1: 32}.get(jnp.dtype(dtype).itemsize, 8)


def _vmem_params():
    """Per-generation (block budget bytes, scoped vmem limit, input buffers)."""
    try:
        cap = int(pltpu.get_tpu_info().vmem_capacity_bytes)
    except Exception:
        cap = None
    if cap is not None and cap >= 96 * _MIB:     # v5e / v6e: 128 MiB physical
        return 12 * _MIB, 64 * _MIB, 2
    if cap is not None:                          # v7x: 64 MiB physical
        return 8 * _MIB, 48 * _MIB, 3
    return 8 * _MIB, 48 * _MIB, 2                # unknown -> conservative


def _tv_kernel(x_ref, o_ref, *, n_planes, img_h, plane_ragged, h_ragged,
               use_roll):
    x = x_ref[...]                               # (tb, th, W), input dtype
    tb, th, w = x.shape
    need_mask = plane_ragged or h_ragged

    # --- validity mask (only traced for ragged configurations) -------------
    if need_mask:
        ok = None
        if plane_ragged:
            p = jax.lax.broadcasted_iota(jnp.int32, (tb, th, w), 0)
            ok = (pl.program_id(0) * tb + p) < n_planes
        if h_ragged:
            r = jax.lax.broadcasted_iota(jnp.int32, (tb, th, w), 1)
            c = (pl.program_id(1) * th + r) < img_h
            ok = c if ok is None else (ok & c)
        # Zeroing invalid planes/rows makes every width-direction term of an
        # invalid row exactly 0 (w-diffs never cross rows), so the w path
        # below needs no further masking.
        x = jnp.where(ok, x, 0)

    # --- vertical (height) TV: sublane-offset diff, never crosses planes ---
    if th > 1:
        ah = jnp.abs(x[:, 1:, :] - x[:, :-1, :])          # (tb, th-1, W)
        if need_mask:
            # diff r pairs rows (r, r+1); valid iff row r+1 is valid.
            hm = None
            if plane_ragged:
                p = jax.lax.broadcasted_iota(jnp.int32, (tb, th - 1, w), 0)
                hm = (pl.program_id(0) * tb + p) < n_planes
            if h_ragged:
                r = jax.lax.broadcasted_iota(jnp.int32, (tb, th - 1, w), 1)
                c = (pl.program_id(1) * th + r + 1) < img_h
                hm = c if hm is None else (hm & c)
            ah = jnp.where(hm, ah, 0)
        h_tv = jnp.sum(ah, dtype=jnp.float32)
    else:
        h_tv = jnp.float32(0.0)

    # --- horizontal (width) TV ---------------------------------------------
    if w > 1:
        if use_roll:
            # XLU lane rotation + exact wrap-pair correction: the rolled diff
            # holds every adjacent pair once plus one wrap pair per row
            # (independent of roll direction), which we subtract back out.
            rolled = pltpu.roll(x, shift=1, axis=2)
            aw = jnp.abs(x - rolled)
            wrap = jnp.abs(x[:, :, :1] - x[:, :, w - 1:])
            w_tv = (jnp.sum(aw, dtype=jnp.float32)
                    - jnp.sum(wrap, dtype=jnp.float32))
        else:
            # Lane-unaligned widths (e.g. W = 16): plain slice fallback.
            aw = jnp.abs(x[:, :, 1:] - x[:, :, :-1])
            w_tv = jnp.sum(aw, dtype=jnp.float32)
    else:
        w_tv = jnp.float32(0.0)

    # --- single lane-dense per-block partial slab: h @ lane 0, w @ lane 1 --
    nd = len(o_ref.shape)
    sub = jax.lax.broadcasted_iota(jnp.int32, o_ref.shape, nd - 2)
    lane = jax.lax.broadcasted_iota(jnp.int32, o_ref.shape, nd - 1)
    zero = jnp.zeros(o_ref.shape, jnp.float32)
    o_ref[...] = jnp.where((sub == 0) & (lane == 0), h_tv,
                           jnp.where((sub == 0) & (lane == 1), w_tv, zero))


def tv_loss(x, tv_loss_weight=1.0, *, vmem_block_bytes=None):
    """Pallas implementation of TVLoss.forward for NCHW input x."""
    B, C, H, W = x.shape
    N = B * C
    x3 = x.reshape(N, H, W)                      # free (row-major) reshape

    itemsize = jnp.dtype(x.dtype).itemsize
    sub_tile = _sublane_tile(x.dtype)
    block_budget, vmem_limit, n_buf = _vmem_params()
    if vmem_block_bytes is not None:
        block_budget = int(vmem_block_bytes)

    # Padded VMEM footprint (feedback: size against the (sublane, 128)-padded
    # layout, not raw H*W*itemsize).
    w_pad = _round_up(W, 128)
    row_bytes = w_pad * itemsize
    plane_bytes = _round_up(H, sub_tile) * row_bytes

    if plane_bytes <= block_budget:
        # -------- whole planes per block (common case) --------
        th, nb_h = H, 1
        tb_max = max(1, block_budget // plane_bytes)
        if tb_max >= N:
            tb = N
        else:
            tb = tb_max
            for d in range(tb_max, 0, -1):        # prefer tb | N -> no ragged mask
                if N % d == 0:
                    if 2 * d >= tb_max:
                        tb = d
                    break
    else:
        # -------- single plane exceeds the budget: tile H --------
        tb = 1
        th = max(sub_tile, ((block_budget // row_bytes) // sub_tile) * sub_tile)
        th = min(th, H)
        if th < H:
            th = max(sub_tile, (th // sub_tile) * sub_tile)
        nb_h = -(-H // th)

    nb_p = -(-N // tb)
    plane_ragged = (N % tb) != 0
    h_ragged = (H % th) != 0
    use_roll = (W % 128) == 0
    # TODO(synk): lane-dense folding (k*W columns -> 128-wide last axis) for
    # W < 128 inputs so VPU/VMEM are not 128/W-underutilized on tiny widths.

    kernel = functools.partial(
        _tv_kernel, n_planes=N, img_h=H,
        plane_ragged=plane_ragged, h_ragged=h_ragged, use_roll=use_roll)

    in_spec = pl.BlockSpec((tb, th, W), lambda i, j: (i, j, 0))
    if n_buf > 2:
        try:  # deeper input pipelining (v7x); fall back silently if unsupported
            in_spec = pl.BlockSpec((tb, th, W), lambda i, j: (i, j, 0),
                                   pipeline_mode=pl.Buffered(n_buf))
        except Exception:
            pass

    cost = pl.CostEstimate(
        flops=6 * N * H * W,
        transcendentals=0,
        bytes_accessed=N * H * W * itemsize + nb_p * nb_h * 8 * 128 * 4)

    parts = pl.pallas_call(
        kernel,
        out_shape=jax.ShapeDtypeStruct((nb_p, nb_h, 8, 128), jnp.float32),
        grid=(nb_p, nb_h),
        in_specs=[in_spec],
        out_specs=pl.BlockSpec((1, 1, 8, 128), lambda i, j: (i, j, 0, 0)),
        compiler_params=pltpu.CompilerParams(
            # Per-block partial outputs -> race-free on both axes.
            # TODO(synk): pltpu.CORE_PARALLEL on the plane axis for v7x's 2 TCs.
            dimension_semantics=("parallel", "parallel"),
            vmem_limit_bytes=vmem_limit),
        cost_estimate=cost,
    )(x3)

    h_tv = jnp.sum(parts[:, :, 0, 0])
    w_tv = jnp.sum(parts[:, :, 0, 1])

    # h-diffs that straddle H-chunk boundaries: tiny wrapper-side gather.
    if nb_h > 1:
        seam = np.arange(1, nb_h) * th
        seam = seam[seam < H]
        if seam.size:
            h_tv = h_tv + jnp.sum(
                jnp.abs(x3[:, seam, :] - x3[:, seam - 1, :]), dtype=jnp.float32)

    # Faithful reproduction of the PyTorch TVLoss normalization (including its
    # per-count averaging and /batch; H==1 or W==1 divides by zero, as torch).
    count_h = C * (H - 1) * W
    count_w = C * H * (W - 1)
    return tv_loss_weight * 2.0 * (h_tv / count_h + w_tv / count_w) / B


def tv_loss_ref(x, tv_loss_weight=1.0):
    """Pure-JAX reference matching the PyTorch semantics exactly."""
    B, C, H, W = x.shape
    xf = x.astype(jnp.float32)
    count_h = C * (H - 1) * W
    count_w = C * H * (W - 1)
    h_tv = jnp.sum(jnp.abs(xf[:, :, 1:, :] - xf[:, :, :H - 1, :]))
    w_tv = jnp.sum(jnp.abs(xf[:, :, :, 1:] - xf[:, :, :, :W - 1]))
    return tv_loss_weight * 2.0 * (h_tv / count_h + w_tv / count_w) / B


if __name__ == "__main__":
    k1, k2, k3, k4 = jax.random.split(jax.random.PRNGKey(0), 4)

    # 1) Nominal small NCHW shape (W < 128 -> lane-slice path, one block).
    x1 = jax.random.normal(k1, (2, 4, 16, 16), dtype=jnp.float32)
    out1 = jax.block_until_ready(tv_loss(x1, tv_loss_weight=1.0))
    ref1 = tv_loss_ref(x1, tv_loss_weight=1.0)
    assert jnp.allclose(out1, ref1, rtol=1e-4, atol=1e-5), (out1, ref1)

    # 2) Lane-aligned width -> pltpu.roll path.
    x2 = jax.random.normal(k2, (1, 2, 8, 128), dtype=jnp.float32)
    out2 = jax.block_until_ready(tv_loss(x2))
    ref2 = tv_loss_ref(x2)
    assert jnp.allclose(out2, ref2, rtol=1e-4, atol=1e-5), (out2, ref2)

    # 3) Ragged plane count (N=5, tb=3) -> in-kernel plane mask, no padding copy.
    x3 = jax.random.normal(k3, (1, 5, 8, 256), dtype=jnp.float32)
    out3 = jax.block_until_ready(tv_loss(x3, vmem_block_bytes=3 * 8 * 256 * 4))
    ref3 = tv_loss_ref(x3)
    assert jnp.allclose(out3, ref3, rtol=1e-4, atol=1e-5), (out3, ref3)

    # 4) Plane bigger than the block budget -> H tiling + seam term + ragged-H mask.
    x4 = jax.random.normal(k4, (1, 1, 24, 256), dtype=jnp.float32)
    out4 = jax.block_until_ready(tv_loss(x4, vmem_block_bytes=16 * 256 * 4))
    ref4 = tv_loss_ref(x4)
    assert jnp.allclose(out4, ref4, rtol=1e-4, atol=1e-5), (out4, ref4)

    print("KERNEL_OK")
</pallas_src>

<mosaic_0001>
module attributes {stable_mosaic.version = 11 : i64} {
  func.func @_tv_kernel(%arg0: i32, %arg1: i32, %arg2: memref<8x16x16xf32, #tpu.memory_space<vmem>>, %arg3: memref<1x1x8x128xf32, #tpu.memory_space<vmem>>) attributes {dimension_semantics = [#tpu.dimension_semantics<parallel>, #tpu.dimension_semantics<parallel>], iteration_bounds = array<i64: 1, 1>, scalar_prefetch = 0 : i64, scratch_operands = 0 : i64, tpu.core_type = #tpu.core_type<tc>, window_params = [{transform_indices = @transform_0, window_bounds = array<i64: 8, 16, 16>}, {transform_indices = @transform_1, window_bounds = array<i64: 1, 1, 8, 128>}]} {
    %c0 = arith.constant 0 : index
    %c0_0 = arith.constant 0 : index
    %c0_1 = arith.constant 0 : index
    %0 = vector.load %arg2[%c0, %c0_0, %c0_1] : memref<8x16x16xf32, #tpu.memory_space<vmem>>, vector<8x16x16xf32>
    %1 = vector.extract_strided_slice %0 {offsets = [0, 1, 0], sizes = [8, 15, 16], strides = [1, 1, 1]} : vector<8x16x16xf32> to vector<8x15x16xf32>
    %2 = vector.extract_strided_slice %0 {offsets = [0, 0, 0], sizes = [8, 15, 16], strides = [1, 1, 1]} : vector<8x16x16xf32> to vector<8x15x16xf32>
    %3 = arith.subf %1, %2 : vector<8x15x16xf32>
    %4 = math.absf %3 : vector<8x15x16xf32>
    %5 = vector.shape_cast %4 : vector<8x15x16xf32> to vector<1x8x15x16xf32>
    %cst = arith.constant dense<0.000000e+00> : vector<1xf32>
    %6 = vector.multi_reduction <add>, %5, %cst [1, 2, 3] : vector<1x8x15x16xf32> to vector<1xf32>
    %7 = vector.shape_cast %6 : vector<1xf32> to vector<1x1x1x1xf32>
    %8 = vector.extract %7[0, 0, 0, 0] : f32 from vector<1x1x1x1xf32>
    %9 = vector.extract_strided_slice %0 {offsets = [0, 0, 1], sizes = [8, 16, 15], strides = [1, 1, 1]} : vector<8x16x16xf32> to vector<8x16x15xf32>
    %10 = vector.extract_strided_slice %0 {offsets = [0, 0, 0], sizes = [8, 16, 15], strides = [1, 1, 1]} : vector<8x16x16xf32> to vector<8x16x15xf32>
    %11 = arith.subf %9, %10 : vector<8x16x15xf32>
    %12 = math.absf %11 : vector<8x16x15xf32>
    %13 = vector.shape_cast %12 : vector<8x16x15xf32> to vector<1x8x16x15xf32>
    %cst_2 = arith.constant dense<0.000000e+00> : vector<1xf32>
    %14 = vector.multi_reduction <add>, %13, %cst_2 [1, 2, 3] : vector<1x8x16x15xf32> to vector<1xf32>
    %15 = vector.shape_cast %14 : vector<1xf32> to vector<1x1x1x1xf32>
    %16 = vector.extract %15[0, 0, 0, 0] : f32 from vector<1x1x1x1xf32>
    %17 = tpu.iota {dimensions = array<i32: 2>} : vector<1x1x8x128xi32>
    %18 = tpu.iota {dimensions = array<i32: 3>} : vector<1x1x8x128xi32>
    %cst_3 = arith.constant 0.000000e+00 : f32
    %19 = vector.broadcast %cst_3 : f32 to vector<1x1x8x128xf32>
    %c0_i32 = arith.constant 0 : i32
    %20 = vector.broadcast %c0_i32 : i32 to vector<1x1x8x128xi32>
    %21 = arith.cmpi eq, %17, %20 : vector<1x1x8x128xi32>
    %c0_i32_4 = arith.constant 0 : i32
    %22 = vector.broadcast %c0_i32_4 : i32 to vector<1x1x8x128xi32>
    %23 = arith.cmpi eq, %18, %22 : vector<1x1x8x128xi32>
    %24 = arith.andi %21, %23 : vector<1x1x8x128xi1>
    %c0_i32_5 = arith.constant 0 : i32
    %25 = vector.broadcast %c0_i32_5 : i32 to vector<1x1x8x128xi32>
    %26 = arith.cmpi eq, %17, %25 : vector<1x1x8x128xi32>
    %c1_i32 = arith.constant 1 : i32
    %27 = vector.broadcast %c1_i32 : i32 to vector<1x1x8x128xi32>
    %28 = arith.cmpi eq, %18, %27 : vector<1x1x8x128xi32>
    %29 = arith.andi %26, %28 : vector<1x1x8x128xi1>
    %30 = vector.broadcast %16 : f32 to vector<1x1x8x128xf32>
    %31 = arith.select %29, %30, %19 : vector<1x1x8x128xi1>, vector<1x1x8x128xf32>
    %32 = vector.broadcast %8 : f32 to vector<1x1x8x128xf32>
    %33 = arith.select %24, %32, %31 : vector<1x1x8x128xi1>, vector<1x1x8x128xf32>
    %c0_6 = arith.constant 0 : index
    %c0_7 = arith.constant 0 : index
    %c0_8 = arith.constant 0 : index
    %c0_9 = arith.constant 0 : index
    %34 = vector.load %arg3[%c0_6, %c0_7, %c0_8, %c0_9] : memref<1x1x8x128xf32, #tpu.memory_space<vmem>>, vector<1x1x8x128xf32>
    tpu.vector_store %arg3[%c0_6, %c0_7, %c0_8, %c0_9], %33 {strides = array<i32>} : memref<1x1x8x128xf32, #tpu.memory_space<vmem>>, vector<1x1x8x128xf32>,
    return
  }
  func.func @transform_0(%arg0: i32, %arg1: i32) -> (i32, i32, i32) {
    %c0_i32 = arith.constant 0 : i32
    %c0_i32_0 = arith.constant 0 : i32
    return %arg0, %arg1, %c0_i32 : i32, i32, i32
  }
  func.func @transform_1(%arg0: i32, %arg1: i32) -> (i32, i32, i32, i32) {
    %c0_i32 = arith.constant 0 : i32
    %c0_i32_0 = arith.constant 0 : i32
    %c0_i32_1 = arith.constant 0 : i32
    return %arg0, %arg1, %c0_i32, %c0_i32_0 : i32, i32, i32, i32
  }
}

</mosaic_0001>

<llo_original>
// kernel: tpu_custom_call.1
$region0: #{tpu_custom_call.1}
  #allocation0 [shape = 'u32[]', space=smem, size = 0x4, offset = 0x4, fixed_abs, tag = 'smem constant byte address 0x4 - core index']
  #allocation1 [shape = 'u32[144,128]{1,0:T(1,128)}', space=vmem, size = 0x12000, scoped, tag = 'internal scratch']
  %s0 = inlined_call_operand.hbm [shape: f32[8,16,16], index: 0, kind: input, shape index: {}]
  %s1 = inlined_call_operand.hbm [shape: f32[1,1,8,128], index: 1, kind: output, shape index: {}]
  %s2 = sld [smem:[#allocation0]]
  $region18: #{tpu_custom_call.1} parent=0
    _
  %s4 = ssub.s32 1, %s2
  %s5 = scalar_select 0, %s4, %s2
  $region1: #{tpu_custom_call.1} parent=0
    #allocation2 [shape = 'u8[65536]{0}', space=vmem, size = 0x10000, scoped, tag = 'input window, operand 0, single buffered']
    #allocation3 [shape = 's32[1]{0}', space=sflag, size = 0x4, scoped, tag = 'scoped memory for tpu_custom_call.1']
    #allocation4 [shape = 's32[1]{0}', space=sflag, size = 0x4, scoped, tag = 'scoped memory for tpu_custom_call.1']
    #allocation5 [shape = 'u8[4096]{0}', space=vmem, size = 0x1000, scoped, tag = 'output window, operand 0, single buffered']
    %6 = vsyncpa [#allocation3], 0
    %7 = vsyncpa [#allocation4], 0
    // Predicated region
    $region2: #{tpu_custom_call.1} parent=1 // pred_check
      _
    $region3: #{tpu_custom_call.1} parent=1 // pred_check_branch
      %9 = sbr.rel (0) target = $region5
    $region4: #{tpu_custom_call.1} parent=1 // pred_region
      %s11 = ssub.s32 2048, 2048
      %12 = vsyncadd [#allocation3], %s11
      %s13 = sshll.u32 [#allocation2], 4
      %s14 = int_to_ptr.vmem [resolvable:$true] %s13
      %19 = dma.hbm_to_vmem [thread:$0]  %s0, 2048, %s14, [#allocation3], 128, 128, 8
    $region5: #{tpu_custom_call.1} parent=1 // pred_fallthru
      _
    // Predicated region
    $region6: #{tpu_custom_call.1} parent=1 // pred_check
      _
    $region7: #{tpu_custom_call.1} parent=1 // pred_check_branch
      %21 = sbr.rel (0) target = $region9
    $region8: #{tpu_custom_call.1} parent=1 // pred_region
      %22 = dma.done [#allocation3], 2048
    $region9: #{tpu_custom_call.1} parent=1 // pred_fallthru
      _
    %v23 = vld [vmem:[#allocation2] sm:$0xff]
    %v24 = vld [vmem:[#allocation2 + $0x8] sm:$0xff]
    %v25 = vld [vmem:[#allocation2 + $0x10] sm:$0xff]
    %v26 = vld [vmem:[#allocation2 + $0x18] sm:$0xff]
    %v27 = vld [vmem:[#allocation2 + $0x20] sm:$0xff]
    %v28 = vld [vmem:[#allocation2 + $0x28] sm:$0xff]
    %v29 = vld [vmem:[#allocation2 + $0x30] sm:$0xff]
    %v30 = vld [vmem:[#allocation2 + $0x38] sm:$0xff]
    %v31 = vld [vmem:[#allocation2 + $0x40] sm:$0xff]
    %v32 = vld [vmem:[#allocation2 + $0x48] sm:$0xff]
    %v33 = vld [vmem:[#allocation2 + $0x50] sm:$0xff]
    %v34 = vld [vmem:[#allocation2 + $0x58] sm:$0xff]
    %v35 = vld [vmem:[#allocation2 + $0x60] sm:$0xff]
    %v36 = vld [vmem:[#allocation2 + $0x68] sm:$0xff]
    %v37 = vld [vmem:[#allocation2 + $0x70] sm:$0xff]
    %v38 = vld [vmem:[#allocation2 + $0x78] sm:$0xff]
    %vm55 = vcmask 1040384
    %v56 = vrot.slane %v23, 7
    %v57 = vrot.slane %v24, 7
    %v58 = vsel %vm55, %v56, %v57
    %v59 = vrot.slane %v25, 7
    %v60 = vrot.slane %v26, 7
    %v61 = vsel %vm55, %v59, %v60
    %v62 = vrot.slane %v27, 7
    %v63 = vrot.slane %v28, 7
    %v64 = vsel %vm55, %v62, %v63
    %v65 = vrot.slane %v29, 7
    %v66 = vrot.slane %v30, 7
    %v67 = vsel %vm55, %v65, %v66
    %v68 = vrot.slane %v31, 7
    %v69 = vrot.slane %v32, 7
    %v70 = vsel %vm55, %v68, %v69
    %v71 = vrot.slane %v33, 7
    %v72 = vrot.slane %v34, 7
    %v73 = vsel %vm55, %v71, %v72
    %v74 = vrot.slane %v35, 7
    %v75 = vrot.slane %v36, 7
    %v76 = vsel %vm55, %v74, %v75
    %v77 = vrot.slane %v37, 7
    %v78 = vrot.slane %v38, 7
    %v79 = vsel %vm55, %v77, %v78
    %v96 = vsub.f32 %v23, %v56
    %v97 = vsub.f32 %v24, %v58
    %v98 = vsub.f32 %v25, %v59
    %v99 = vsub.f32 %v26, %v61
    %v100 = vsub.f32 %v27, %v62
    %v101 = vsub.f32 %v28, %v64
    %v102 = vsub.f32 %v29, %v65
    %v103 = vsub.f32 %v30, %v67
    %v104 = vsub.f32 %v31, %v68
    %v105 = vsub.f32 %v32, %v70
    %v106 = vsub.f32 %v33, %v71
    %v107 = vsub.f32 %v34, %v73
    %v108 = vsub.f32 %v35, %v74
    %v109 = vsub.f32 %v36, %v76
    %v110 = vsub.f32 %v37, %v77
    %v111 = vsub.f32 %v38, %v79
    %v112 = vand.u32 2147483647, %v96
    %v113 = vand.u32 2147483647, %v97
    %v114 = vand.u32 2147483647, %v98
    %v115 = vand.u32 2147483647, %v99
    %v116 = vand.u32 2147483647, %v100
    %v117 = vand.u32 2147483647, %v101
    %v118 = vand.u32 2147483647, %v102
    %v119 = vand.u32 2147483647, %v103
    %v120 = vand.u32 2147483647, %v104
    %v121 = vand.u32 2147483647, %v105
    %v122 = vand.u32 2147483647, %v106
    %v123 = vand.u32 2147483647, %v107
    %v124 = vand.u32 2147483647, %v108
    %v125 = vand.u32 2147483647, %v109
    %v126 = vand.u32 2147483647, %v110
    %v127 = vand.u32 2147483647, %v111
    %vm144 = vcmask 1046528
    %v145 = vrot.slane %v112, 1
    %v146 = vrot.slane %v113, 1
    %v147 = vsel %vm144, %v145, %v146
    %v148 = vrot.slane %v114, 1
    %v149 = vrot.slane %v115, 1
    %v150 = vsel %vm144, %v148, %v149
    %v151 = vrot.slane %v116, 1
    %v152 = vrot.slane %v117, 1
    %v153 = vsel %vm144, %v151, %v152
    %v154 = vrot.slane %v118, 1
    %v155 = vrot.slane %v119, 1
    %v156 = vsel %vm144, %v154, %v155
    %v157 = vrot.slane %v120, 1
    %v158 = vrot.slane %v121, 1
    %v159 = vsel %vm144, %v157, %v158
    %v160 = vrot.slane %v122, 1
    %v161 = vrot.slane %v123, 1
    %v162 = vsel %vm144, %v160, %v161
    %v163 = vrot.slane %v124, 1
    %v164 = vrot.slane %v125, 1
    %v165 = vsel %vm144, %v163, %v164
    %v166 = vrot.slane %v126, 1
    %v167 = vrot.slane %v127, 1
    %v168 = vsel %vm144, %v166, %v167
    %vm185 = vcmask 130048
    %v186 = vsel %vm185, %v147, 0.0
    %vm187 = vcmask 129024
    %v188 = vsel %vm187, %v146, 0.0
    %v189 = vadd.f32 %v186, %v188
    %v190 = vsel %vm185, %v150, 0.0
    %v191 = vadd.f32 %v189, %v190
    %v192 = vsel %vm187, %v149, 0.0
    %v193 = vadd.f32 %v191, %v192
    %v194 = vsel %vm185, %v153, 0.0
    %v195 = vadd.f32 %v193, %v194
    %v196 = vsel %vm187, %v152, 0.0
    %v197 = vadd.f32 %v195, %v196
    %v198 = vsel %vm185, %v156, 0.0
    %v199 = vadd.f32 %v197, %v198
    %v200 = vsel %vm187, %v155, 0.0
    %v201 = vadd.f32 %v199, %v200
    %v202 = vsel %vm185, %v159, 0.0
    %v203 = vadd.f32 %v201, %v202
    %v204 = vsel %vm187, %v158, 0.0
    %v205 = vadd.f32 %v203, %v204
    %v206 = vsel %vm185, %v162, 0.0
    %v207 = vadd.f32 %v205, %v206
    %v208 = vsel %vm187, %v161, 0.0
    %v209 = vadd.f32 %v207, %v208
    %v210 = vsel %vm185, %v165, 0.0
    %v211 = vadd.f32 %v209, %v210
    %v212 = vsel %vm187, %v164, 0.0
    %v213 = vadd.f32 %v211, %v212
    %v214 = vsel %vm185, %v168, 0.0
    %v215 = vadd.f32 %v213, %v214
    %v216 = vsel %vm187, %v167, 0.0
    %v217 = vadd.f32 %v215, %v216
    %218 = vadd.xlane.f32.xlu0 %v217
    %v219 = vpop.xlane.xlu0 %218
    %v220 = vrot.slane %v219, 4
    %v221 = vadd.f32 %v219, %v220
    %v222 = vrot.slane %v221, 2
    %v223 = vadd.f32 %v221, %v222
    %v224 = vrot.slane %v223, 1
    %v225 = vadd.f32 %v223, %v224
    %s226 = vtos %v225
    %227 = vrot.lane.b32.xlu0 %v23, 1
    %v228 = vpop.permute.xlu0 %227
    %229 = vrot.lane.b32.xlu0 %v24, 1
    %v230 = vpop.permute.xlu0 %229
    %231 = vrot.lane.b32.xlu0 %v25, 1
    %v232 = vpop.permute.xlu0 %231
    %233 = vrot.lane.b32.xlu0 %v26, 1
    %v234 = vpop.permute.xlu0 %233
    %235 = vrot.lane.b32.xlu0 %v27, 1
    %v236 = vpop.permute.xlu0 %235
    %237 = vrot.lane.b32.xlu0 %v28, 1
    %v238 = vpop.permute.xlu0 %237
    %239 = vrot.lane.b32.xlu0 %v29, 1
    %v240 = vpop.permute.xlu0 %239
    %241 = vrot.lane.b32.xlu0 %v30, 1
    %v242 = vpop.permute.xlu0 %241
    %243 = vrot.lane.b32.xlu0 %v31, 1
    %v244 = vpop.permute.xlu0 %243
    %245 = vrot.lane.b32.xlu0 %v32, 1
    %v246 = vpop.permute.xlu0 %245
    %247 = vrot.lane.b32.xlu0 %v33, 1
    %v248 = vpop.permute.xlu0 %247
    %249 = vrot.lane.b32.xlu0 %v34, 1
    %v250 = vpop.permute.xlu0 %249
    %251 = vrot.lane.b32.xlu0 %v35, 1
    %v252 = vpop.permute.xlu0 %251
    %253 = vrot.lane.b32.xlu0 %v36, 1
    %v254 = vpop.permute.xlu0 %253
    %255 = vrot.lane.b32.xlu0 %v37, 1
    %v256 = vpop.permute.xlu0 %255
    %257 = vrot.lane.b32.xlu0 %v38, 1
    %v258 = vpop.permute.xlu0 %257
    %v275 = vsub.f32 %v23, %v228
    %v276 = vsub.f32 %v24, %v230
    %v277 = vsub.f32 %v25, %v232
    %v278 = vsub.f32 %v26, %v234
    %v279 = vsub.f32 %v27, %v236
    %v280 = vsub.f32 %v28, %v238
    %v281 = vsub.f32 %v29, %v240
    %v282 = vsub.f32 %v30, %v242
    %v283 = vsub.f32 %v31, %v244
    %v284 = vsub.f32 %v32, %v246
    %v285 = vsub.f32 %v33, %v248
    %v286 = vsub.f32 %v34, %v250
    %v287 = vsub.f32 %v35, %v252
    %v288 = vsub.f32 %v36, %v254
    %v289 = vsub.f32 %v37, %v256
    %v290 = vsub.f32 %v38, %v258
    %v291 = vand.u32 2147483647, %v275
    %v292 = vand.u32 2147483647, %v276
    %v293 = vand.u32 2147483647, %v277
    %v294 = vand.u32 2147483647, %v278
    %v295 = vand.u32 2147483647, %v279
    %v296 = vand.u32 2147483647, %v280
    %v297 = vand.u32 2147483647, %v281
    %v298 = vand.u32 2147483647, %v282
    %v299 = vand.u32 2147483647, %v283
    %v300 = vand.u32 2147483647, %v284
    %v301 = vand.u32 2147483647, %v285
    %v302 = vand.u32 2147483647, %v286
    %v303 = vand.u32 2147483647, %v287
    %v304 = vand.u32 2147483647, %v288
    %v305 = vand.u32 2147483647, %v289
    %v306 = vand.u32 2147483647, %v290
    %323 = vrot.lane.b32.xlu0 %v291, 127
    %v324 = vpop.permute.xlu0 %323
    %325 = vrot.lane.b32.xlu0 %v292, 127
    %v326 = vpop.permute.xlu0 %325
    %327 = vrot.lane.b32.xlu0 %v293, 127
    %v328 = vpop.permute.xlu0 %327
    %329 = vrot.lane.b32.xlu0 %v294, 127
    %v330 = vpop.permute.xlu0 %329
    %331 = vrot.lane.b32.xlu0 %v295, 127
    %v332 = vpop.permute.xlu0 %331
    %333 = vrot.lane.b32.xlu0 %v296, 127
    %v334 = vpop.permute.xlu0 %333
    %335 = vrot.lane.b32.xlu0 %v297, 127
    %v336 = vpop.permute.xlu0 %335
    %337 = vrot.lane.b32.xlu0 %v298, 127
    %v338 = vpop.permute.xlu0 %337
    %339 = vrot.lane.b32.xlu0 %v299, 127
    %v340 = vpop.permute.xlu0 %339
    %341 = vrot.lane.b32.xlu0 %v300, 127
    %v342 = vpop.permute.xlu0 %341
    %343 = vrot.lane.b32.xlu0 %v301, 127
    %v344 = vpop.permute.xlu0 %343
    %345 = vrot.lane.b32.xlu0 %v302, 127
    %v346 = vpop.permute.xlu0 %345
    %347 = vrot.lane.b32.xlu0 %v303, 127
    %v348 = vpop.permute.xlu0 %347
    %349 = vrot.lane.b32.xlu0 %v304, 127
    %v350 = vpop.permute.xlu0 %349
    %351 = vrot.lane.b32.xlu0 %v305, 127
    %v352 = vpop.permute.xlu0 %351
    %353 = vrot.lane.b32.xlu0 %v306, 127
    %v354 = vpop.permute.xlu0 %353
    %vm371 = vcmask 121856
    %v372 = vsel %vm371, %v324, 0.0
    %v373 = vsel %vm371, %v326, 0.0
    %v374 = vadd.f32 %v372, %v373
    %v375 = vsel %vm371, %v328, 0.0
    %v376 = vadd.f32 %v374, %v375
    %v377 = vsel %vm371, %v330, 0.0
    %v378 = vadd.f32 %v376, %v377
    %v379 = vsel %vm371, %v332, 0.0
    %v380 = vadd.f32 %v378, %v379
    %v381 = vsel %vm371, %v334, 0.0
    %v382 = vadd.f32 %v380, %v381
    %v383 = vsel %vm371, %v336, 0.0
    %v384 = vadd.f32 %v382, %v383
    %v385 = vsel %vm371, %v338, 0.0
    %v386 = vadd.f32 %v384, %v385
    %v387 = vsel %vm371, %v340, 0.0
    %v388 = vadd.f32 %v386, %v387
    %v389 = vsel %vm371, %v342, 0.0
    %v390 = vadd.f32 %v388, %v389
    %v391 = vsel %vm371, %v344, 0.0
    %v392 = vadd.f32 %v390, %v391
    %v393 = vsel %vm371, %v346, 0.0
    %v394 = vadd.f32 %v392, %v393
    %v395 = vsel %vm371, %v348, 0.0
    %v396 = vadd.f32 %v394, %v395
    %v397 = vsel %vm371, %v350, 0.0
    %v398 = vadd.f32 %v396, %v397
    %v399 = vsel %vm371, %v352, 0.0
    %v400 = vadd.f32 %v398, %v399
    %v401 = vsel %vm371, %v354, 0.0
    %v402 = vadd.f32 %v400, %v401
    %403 = vadd.xlane.f32.xlu0 %v402
    %v404 = vpop.xlane.xlu0 %403
    %v405 = vrot.slane %v404, 4
    %v406 = vadd.f32 %v404, %v405
    %v407 = vrot.slane %v406, 2
    %v408 = vadd.f32 %v406, %v407
    %v409 = vrot.slane %v408, 1
    %v410 = vadd.f32 %v408, %v409
    %s411 = vtos %v410
    %v412 = vlaneseq
    %v413 = vshrl.u32 %v412, 7
    %v414 = vlaneseq
    %v415 = vand.u32 %v414, 127
    %vm416 = vcmp.eq.s32.totalorder %v413, 0
    %vm417 = vcmp.eq.s32.totalorder %v415, 0
    %vm418 = vmand %vm416, %vm417
    %vm419 = vcmp.eq.s32.totalorder %v415, 1
    %vm420 = vmand %vm416, %vm419
    %v421 = vstv %s411
    %v422 = vsel %vm420, %v421, 0.0
    %v423 = vstv %s226
    %v424 = vsel %vm418, %v423, %v422
    %425 = vst [vmem:[#allocation5] sm:$0xff] %v424
    // Predicated region
    $region10: #{tpu_custom_call.1} parent=1 // pred_check
      _
    $region11: #{tpu_custom_call.1} parent=1 // pred_check_branch
      %427 = sbr.rel (0) target = $region13
    $region12: #{tpu_custom_call.1} parent=1 // pred_region
      %s429 = ssub.s32 128, 128
      %430 = vsyncadd [#allocation4], %s429
      %s432 = sshll.u32 [#allocation5], 4
      %s433 = int_to_ptr.vmem [resolvable:$true] %s432
      %435 = dma.vmem_to_hbm [thread:$0]  %s433, 128, %s1, [#allocation4]
    $region13: #{tpu_custom_call.1} parent=1 // pred_fallthru
      _
    // Predicated region
    $region14: #{tpu_custom_call.1} parent=1 // pred_check
      _
    $region15: #{tpu_custom_call.1} parent=1 // pred_check_branch
      %437 = sbr.rel (0) target = $region17
    $region16: #{tpu_custom_call.1} parent=1 // pred_region
      %438 = dma.done [#allocation4], 128
    $region17: #{tpu_custom_call.1} parent=1 // pred_fallthru
      _
    %439 = vsyncpa [#allocation3], 1
    %440 = vsyncpa [#allocation4], 1

</llo_original>
